<compile_context>
chip_gen: v6e
topology: v6e:2x2x1
jax: 0.10.0
libtpu: 0.0.40
codegen_flags: <defaults>
</compile_context>

<pallas_src>
import math

import numpy as np

import jax
import jax.numpy as jnp
from jax.experimental import pallas as pl
from jax.experimental.pallas import tpu as pltpu


# ----------------------------------------------------------------------------
# One-time parameter packing (host side, out of the forward path).
# ----------------------------------------------------------------------------
def prepare_params(conv_weight, conv_bias, W, *, param_dtype=jnp.bfloat16):
    """Pack Conv2d params into the kernel's banded block-Toeplitz layout.

    conv_weight: (Cout*r, Cin, kh, kw) -> w_pack: (kh, W*Cin, Wc*N) where
        w_pack[kt, w_in*Cin + c, w*N + n] = weight[n, c, kt, w_in - w]
        for 0 <= w_in - w < kw, else 0.  This turns the VALID conv over the
        width axis + channel contraction into a single matmul whose output
        lane index is the fused (conv-width, conv-channel) index w*N + n.
    conv_bias:   (Cout*r,) -> b_row: (1, Wc*N) with b_row[0, w*N + n] = b[n].
    """
    conv_weight = np.asarray(conv_weight, np.float32)
    conv_bias = np.asarray(conv_bias, np.float32)
    N, Cin, kh, kw = conv_weight.shape
    Wc = W - kw + 1

    w_taps = np.transpose(conv_weight, (2, 3, 1, 0))          # (kh, kw, Cin, N)
    t = np.zeros((kh, W, Cin, Wc, N), np.float32)
    for w in range(Wc):
        for kf in range(kw):
            t[:, w + kf, :, w, :] = w_taps[:, kf]
    w_pack = jnp.asarray(t.reshape(kh, W * Cin, Wc * N), param_dtype)
    b_row = jnp.asarray(
        np.tile(conv_bias[None, :], (Wc, 1)).reshape(1, Wc * N), jnp.float32)
    return w_pack, b_row


# ----------------------------------------------------------------------------
# Kernels (single grid step each).
# ----------------------------------------------------------------------------
def _spconv_kernel_2d(x_ref, w_ref, b_ref, o_ref):
    """kh == 1 fast path: whole batch as one MXU matmul.

    x_ref: (B*H, W*Cin) bf16   w_ref: (W*Cin, Wc*N) bf16
    b_ref: (1, Wc*N)    f32    o_ref: (B*H, Wc*N)   f32 (lane-dense, 256 lanes)
    """
    acc = jax.lax.dot_general(
        x_ref[...], w_ref[...], (((1,), (0,)), ((), ())),
        preferred_element_type=jnp.float32)
    o_ref[...] = (acc + b_ref[...]).astype(o_ref.dtype)


def _make_spconv_kernel_3d(kh, Hc):
    """General kh: unrolled sum of kh matmuls, still one grid step."""

    def kernel(x_ref, w_ref, b_ref, o_ref):
        # x_ref: (B, H, W*Cin)  w_ref: (kh, W*Cin, Wc*N)  o_ref: (B, Hc, Wc*N)
        acc = None
        for kt in range(kh):
            xt = x_ref[:, kt:kt + Hc, :]
            d = jax.lax.dot_general(
                xt, w_ref[kt], (((2,), (0,)), ((), ())),
                preferred_element_type=jnp.float32)
            acc = d if acc is None else acc + d
        o_ref[...] = (acc + b_ref[...]).astype(o_ref.dtype)

    return kernel


# ----------------------------------------------------------------------------
# Forward passes.
# ----------------------------------------------------------------------------
def spconv_transpose2d_nhwc(x_nhwc, w_pack, b_row, *, kh, kw, r,
                            out_dtype=jnp.float32):
    """NHWC forward (the fused-model entry point): only free reshapes around
    one pallas_call.  Returns NHWC (B, Hc, Wc*r, Cout)."""
    B, H, W, Cin = x_nhwc.shape
    Hc, Wc = H - kh + 1, W - kw + 1
    WcN = b_row.shape[-1]
    assert WcN % Wc == 0
    N = WcN // Wc
    assert N % r == 0
    Cout = N // r

    x = x_nhwc.astype(w_pack.dtype)
    cparams = pltpu.CompilerParams(dimension_semantics=("arbitrary",))

    if kh == 1:
        # Flatten B*H into the matmul M axis (legal: no H halo when kh == 1).
        out = pl.pallas_call(
            _spconv_kernel_2d,
            out_shape=jax.ShapeDtypeStruct((B * Hc, WcN), out_dtype),
            grid=(1,),
            in_specs=[
                pl.BlockSpec((B * H, W * Cin), lambda i: (0, 0)),
                pl.BlockSpec((W * Cin, WcN), lambda i: (0, 0)),
                pl.BlockSpec((1, WcN), lambda i: (0, 0)),
            ],
            out_specs=pl.BlockSpec((B * Hc, WcN), lambda i: (0, 0)),
            compiler_params=cparams,
        )(x.reshape(B * H, W * Cin), w_pack.reshape(W * Cin, WcN), b_row)
    else:
        out = pl.pallas_call(
            _make_spconv_kernel_3d(kh, Hc),
            out_shape=jax.ShapeDtypeStruct((B, Hc, WcN), out_dtype),
            grid=(1,),
            in_specs=[
                pl.BlockSpec((B, H, W * Cin), lambda i: (0, 0, 0)),
                pl.BlockSpec((kh, W * Cin, WcN), lambda i: (0, 0, 0)),
                pl.BlockSpec((1, WcN), lambda i: (0, 0)),
            ],
            out_specs=pl.BlockSpec((B, Hc, WcN), lambda i: (0, 0, 0)),
            compiler_params=cparams,
        )(x.reshape(B, H, W * Cin), w_pack, b_row)

    # Sub-pixel shuffle: lane index w*N + n with n = j*Cout + c is exactly the
    # row-major index of (w, j, c) -> pure (free) reshape to NHWC output.
    return out.reshape(B, Hc, Wc * r, Cout)


def spconv_transpose2d(x_nchw, w_pack, b_row, *, kh, kw, r,
                       out_dtype=jnp.float32):
    """NCHW compatibility wrapper matching the PyTorch module exactly.
    The two transposes are only needed because the spec is NCHW; an NHWC
    model should call spconv_transpose2d_nhwc directly."""
    x_nhwc = jnp.transpose(x_nchw, (0, 2, 3, 1))
    out_nhwc = spconv_transpose2d_nhwc(x_nhwc, w_pack, b_row,
                                       kh=kh, kw=kw, r=r, out_dtype=out_dtype)
    return jnp.transpose(out_nhwc, (0, 3, 1, 2))


def spconv_transpose2d_reference(x_nchw, conv_weight, conv_bias, r):
    """Pure-JAX (XLA) reference mirroring the PyTorch module exactly, NCHW."""
    out = jax.lax.conv_general_dilated(
        x_nchw, conv_weight, window_strides=(1, 1), padding="VALID",
        dimension_numbers=("NCHW", "OIHW", "NCHW"),
        precision=jax.lax.Precision.HIGHEST)
    out = out + conv_bias[None, :, None, None]
    B, nch, Hc, Wc = out.shape
    out = out.reshape(B, r, nch // r, Hc, Wc)
    out = jnp.transpose(out, (0, 2, 3, 4, 1))
    return out.reshape(B, nch // r, Hc, Wc * r)


if __name__ == "__main__":
    # Shapes consistent with TSTNN usage: SPConvTranspose2d(Cin, Cout, (1, 3), r=2).
    B, Cin, H, W = 2, 8, 16, 18
    Cout, r = 8, 2
    kh, kw = 1, 3

    key = jax.random.PRNGKey(0)
    kx, kwt, kb = jax.random.split(key, 3)
    x = jax.random.normal(kx, (B, Cin, H, W), jnp.float32)
    fan_in = Cin * kh * kw
    conv_weight = (jax.random.normal(kwt, (Cout * r, Cin, kh, kw), jnp.float32)
                   / math.sqrt(fan_in))
    conv_bias = 0.1 * jax.random.normal(kb, (Cout * r,), jnp.float32)

    # One-time parameter packing (hoisted out of the forward path).
    w_pack, b_row = prepare_params(conv_weight, conv_bias, W)

    fwd = jax.jit(lambda xin: spconv_transpose2d(xin, w_pack, b_row,
                                                 kh=kh, kw=kw, r=r))
    y = jax.block_until_ready(fwd(x))
    assert y.shape == (B, Cout, H - kh + 1, (W - kw + 1) * r), y.shape

    y_ref = spconv_transpose2d_reference(x, conv_weight, conv_bias, r)
    # bf16 inputs + f32 accumulation vs Precision.HIGHEST reference.
    if not jnp.allclose(y, y_ref, rtol=2e-2, atol=2e-2):
        max_err = float(jnp.max(jnp.abs(y - y_ref)))
        raise AssertionError(
            f"Pallas output mismatch vs reference, max abs err = {max_err}")

    print("KERNEL_OK")
</pallas_src>

<mosaic_0001>
module attributes {stable_mosaic.version = 11 : i64} {
  func.func @_spconv_kernel_2d(%arg0: i32, %arg1: memref<32x144xbf16, #tpu.memory_space<vmem>>, %arg2: memref<144x256xbf16, #tpu.memory_space<vmem>>, %arg3: memref<1x256xf32, #tpu.memory_space<vmem>>, %arg4: memref<32x256xf32, #tpu.memory_space<vmem>>) attributes {dimension_semantics = [#tpu.dimension_semantics<arbitrary>], iteration_bounds = array<i64: 1>, scalar_prefetch = 0 : i64, scratch_operands = 0 : i64, tpu.core_type = #tpu.core_type<tc>, window_params = [{pipeline_mode = #tpu.pipeline_mode<synchronous>, transform_indices = @transform_0, window_bounds = array<i64: 32, 144>}, {pipeline_mode = #tpu.pipeline_mode<synchronous>, transform_indices = @transform_1, window_bounds = array<i64: 144, 256>}, {pipeline_mode = #tpu.pipeline_mode<synchronous>, transform_indices = @transform_2, window_bounds = array<i64: 1, 256>}, {pipeline_mode = #tpu.pipeline_mode<synchronous>, transform_indices = @transform_3, window_bounds = array<i64: 32, 256>}]} {
    %c0 = arith.constant 0 : index
    %c0_0 = arith.constant 0 : index
    %0 = vector.load %arg1[%c0, %c0_0] : memref<32x144xbf16, #tpu.memory_space<vmem>>, vector<32x144xbf16>
    %c0_1 = arith.constant 0 : index
    %c0_2 = arith.constant 0 : index
    %1 = vector.load %arg2[%c0_1, %c0_2] : memref<144x256xbf16, #tpu.memory_space<vmem>>, vector<144x256xbf16>
    %cst = arith.constant dense<0.000000e+00> : vector<32x256xf32>
    %2 = tpu.matmul %0, %1, %cst {dimension_numbers = #tpu.dot_dimension_numbers<[1], [0], [0], [1], [0, 0, 1, 1], [], []>} : vector<32x144xbf16>, vector<144x256xbf16>, vector<32x256xf32> -> vector<32x256xf32>
    %c0_3 = arith.constant 0 : index
    %c0_4 = arith.constant 0 : index
    %3 = vector.load %arg3[%c0_3, %c0_4] : memref<1x256xf32, #tpu.memory_space<vmem>>, vector<1x256xf32>
    %4 = vector.broadcast %3 : vector<1x256xf32> to vector<32x256xf32>
    %5 = arith.addf %2, %4 : vector<32x256xf32>
    %c0_5 = arith.constant 0 : index
    %c0_6 = arith.constant 0 : index
    %6 = vector.load %arg4[%c0_5, %c0_6] : memref<32x256xf32, #tpu.memory_space<vmem>>, vector<32x256xf32>
    tpu.vector_store %arg4[%c0_5, %c0_6], %5 {strides = array<i32>} : memref<32x256xf32, #tpu.memory_space<vmem>>, vector<32x256xf32>,
    return
  }
  func.func @transform_0(%arg0: i32) -> (i32, i32) {
    %c0_i32 = arith.constant 0 : i32
    %c0_i32_0 = arith.constant 0 : i32
    %c0_i32_1 = arith.constant 0 : i32
    return %c0_i32, %c0_i32_0 : i32, i32
  }
  func.func @transform_1(%arg0: i32) -> (i32, i32) {
    %c0_i32 = arith.constant 0 : i32
    %c0_i32_0 = arith.constant 0 : i32
    %c0_i32_1 = arith.constant 0 : i32
    return %c0_i32, %c0_i32_0 : i32, i32
  }
  func.func @transform_2(%arg0: i32) -> (i32, i32) {
    %c0_i32 = arith.constant 0 : i32
    %c0_i32_0 = arith.constant 0 : i32
    %c0_i32_1 = arith.constant 0 : i32
    return %c0_i32, %c0_i32_0 : i32, i32
  }
  func.func @transform_3(%arg0: i32) -> (i32, i32) {
    %c0_i32 = arith.constant 0 : i32
    %c0_i32_0 = arith.constant 0 : i32
    %c0_i32_1 = arith.constant 0 : i32
    return %c0_i32, %c0_i32_0 : i32, i32
  }
}

</mosaic_0001>

<llo_original>
// kernel: _lambda_.1
$region0: #{_lambda_.1}
  #allocation0 [shape = 'u32[]', space=smem, size = 0x4, offset = 0x4, fixed_abs, tag = 'smem constant byte address 0x4 - core index']
  #allocation1 [shape = 'u32[144,128]{1,0:T(1,128)}', space=vmem, size = 0x12000, scoped, tag = 'internal scratch']
  %s0 = inlined_call_operand.vmem [shape: bf16[32,144], index: 0, kind: input, shape index: {}]
  %s1 = inlined_call_operand.vmem [shape: bf16[144,256], index: 1, kind: input, shape index: {}]
  %s2 = inlined_call_operand.vmem [shape: f32[1,256], index: 2, kind: input, shape index: {}]
  %s3 = inlined_call_operand.vmem [shape: f32[32,256], index: 3, kind: output, shape index: {}]
  %s4 = sld [smem:[#allocation0]]
  $region22: #{_lambda_.1} parent=0
    _
  %s6 = ssub.s32 1, %s4
  %s7 = scalar_select 0, %s6, %s4
  // Predicated region
  $region2: #{_lambda_.1} parent=0 // pred_check
    _
  $region3: #{_lambda_.1} parent=0 // pred_check_branch
    %9 = sbr.rel (0) target = $region5
  $region4: #{_lambda_.1} parent=0 // pred_region
    _
  $region5: #{_lambda_.1} parent=0 // pred_fallthru
    _
  // Predicated region
  $region6: #{_lambda_.1} parent=0 // pred_check
    _
  $region7: #{_lambda_.1} parent=0 // pred_check_branch
    %11 = sbr.rel (0) target = $region9
  $region8: #{_lambda_.1} parent=0 // pred_region
    _
  $region9: #{_lambda_.1} parent=0 // pred_fallthru
    _
  // Predicated region
  $region10: #{_lambda_.1} parent=0 // pred_check
    _
  $region11: #{_lambda_.1} parent=0 // pred_check_branch
    %13 = sbr.rel (0) target = $region13
  $region12: #{_lambda_.1} parent=0 // pred_region
    _
  $region13: #{_lambda_.1} parent=0 // pred_fallthru
    _
  %v15 = vld [vmem:[%s0] sm:$0xff]
  %v16 = vld [vmem:[%s0 + $0x8] sm:$0xff]
  %v17 = vld [vmem:[%s0 + $0x10] sm:$0xff]
  %v18 = vld [vmem:[%s0 + $0x18] sm:$0xff]
  %v19 = vld [vmem:[%s1] sm:$0xff]
  %v20 = vld [vmem:[%s1 + $0x8] sm:$0xff]
  %v21 = vld [vmem:[%s1 + $0x10] sm:$0xff]
  %v22 = vld [vmem:[%s1 + $0x18] sm:$0xff]
  %v23 = vld [vmem:[%s1 + $0x20] sm:$0xff]
  %v24 = vld [vmem:[%s1 + $0x28] sm:$0xff]
  %v25 = vld [vmem:[%s1 + $0x30] sm:$0xff]
  %v26 = vld [vmem:[%s1 + $0x38] sm:$0xff]
  %v27 = vld [vmem:[%s1 + $0x40] sm:$0xff]
  %v28 = vld [vmem:[%s1 + $0x48] sm:$0xff]
  %v29 = vld [vmem:[%s1 + $0x50] sm:$0xff]
  %v30 = vld [vmem:[%s1 + $0x58] sm:$0xff]
  %v31 = vld [vmem:[%s1 + $0x60] sm:$0xff]
  %v32 = vld [vmem:[%s1 + $0x68] sm:$0xff]
  %v33 = vld [vmem:[%s1 + $0x70] sm:$0xff]
  %v34 = vld [vmem:[%s1 + $0x78] sm:$0xff]
  %v35 = vld [vmem:[%s1 + $0x80] sm:$0xff]
  %v36 = vld [vmem:[%s1 + $0x88] sm:$0xff]
  %v37 = vld [vmem:[%s2] sm:$0x3]
  %v39 = vlaneseq
  %v40 = vshrl.u32 %v39, 7
  %v41 = vsub.s32 0, %v40
  %v42 = vrot.slane %v37, %v41
  %v43 = vlaneseq
  %v44 = vshrl.u32 %v43, 7
  %v45 = vsub.s32 1, %v44
  %v46 = vrot.slane %v37, %v45
  %v53 = vunpack.c.l.b16 %v15
  %v54 = vunpack.c.h.b16 %v15
  %v55 = vunpack.c.l.b16 %v16
  %v56 = vunpack.c.h.b16 %v16
  %v57 = vunpack.c.l.b16 %v17
  %v58 = vunpack.c.h.b16 %v17
  %v59 = vunpack.c.l.b16 %v18
  %v60 = vunpack.c.h.b16 %v18
  %v61 = vpack.c.b16 %v55, %v53
  %v62 = vpack.c.b16 %v56, %v54
  %v63 = vpack.c.b16 %v59, %v57
  %v64 = vpack.c.b16 %v60, %v58
  %v85 = vunpack.c.l.b16 %v19
  %v86 = vunpack.c.h.b16 %v19
  %v87 = vunpack.c.l.b16 %v20
  %v88 = vunpack.c.h.b16 %v20
  %v89 = vunpack.c.l.b16 %v21
  %v90 = vunpack.c.h.b16 %v21
  %v91 = vunpack.c.l.b16 %v22
  %v92 = vunpack.c.h.b16 %v22
  %v93 = vunpack.c.l.b16 %v23
  %v94 = vunpack.c.h.b16 %v23
  %v95 = vunpack.c.l.b16 %v24
  %v96 = vunpack.c.h.b16 %v24
  %v97 = vunpack.c.l.b16 %v25
  %v98 = vunpack.c.h.b16 %v25
  %v99 = vunpack.c.l.b16 %v26
  %v100 = vunpack.c.h.b16 %v26
  %v101 = vunpack.c.l.b16 %v27
  %v102 = vunpack.c.h.b16 %v27
  %v103 = vunpack.c.l.b16 %v28
  %v104 = vunpack.c.h.b16 %v28
  %v105 = vunpack.c.l.b16 %v29
  %v106 = vunpack.c.h.b16 %v29
  %v107 = vunpack.c.l.b16 %v30
  %v108 = vunpack.c.h.b16 %v30
  %v109 = vunpack.c.l.b16 %v31
  %v110 = vunpack.c.h.b16 %v31
  %v111 = vunpack.c.l.b16 %v32
  %v112 = vunpack.c.h.b16 %v32
  %v113 = vunpack.c.l.b16 %v33
  %v114 = vunpack.c.h.b16 %v33
  %v115 = vunpack.c.l.b16 %v34
  %v116 = vunpack.c.h.b16 %v34
  %v117 = vunpack.c.l.b16 %v35
  %v118 = vunpack.c.h.b16 %v35
  %v119 = vunpack.c.l.b16 %v36
  %v120 = vunpack.c.h.b16 %v36
  %v121 = vpack.c.b16 %v87, %v85
  %v122 = vpack.c.b16 %v88, %v86
  %v123 = vpack.c.b16 %v91, %v89
  %v124 = vpack.c.b16 %v92, %v90
  %v125 = vpack.c.b16 %v95, %v93
  %v126 = vpack.c.b16 %v96, %v94
  %v127 = vpack.c.b16 %v99, %v97
  %v128 = vpack.c.b16 %v100, %v98
  %v129 = vpack.c.b16 %v103, %v101
  %v130 = vpack.c.b16 %v104, %v102
  %v131 = vpack.c.b16 %v107, %v105
  %v132 = vpack.c.b16 %v108, %v106
  %v133 = vpack.c.b16 %v111, %v109
  %v134 = vpack.c.b16 %v112, %v110
  %v135 = vpack.c.b16 %v115, %v113
  %v136 = vpack.c.b16 %v116, %v114
  %v137 = vpack.c.b16 %v119, %v117
  %v138 = vpack.c.b16 %v120, %v118
  %vm157 = vcmask 130048
  %v159 = vsel %vm157, %v62, 0
  %v162 = vsel %vm157, %v64, 0
  %164 = vmatprep.subr.bf16.mxu0 %v136
  %165 = vmatpush1.bf16.msra.mxu0 %v135
  %166 = vmatprep.subr.bf16.mxu0 %v134
  %167 = vmatpush1.bf16.msra.mxu0 %v133
  %168 = vmatprep.subr.bf16.mxu0 %v132
  %169 = vmatpush1.bf16.msra.mxu0 %v131
  %170 = vmatprep.subr.bf16.mxu0 %v130
  %171 = vmatpush1.bf16.msra.mxu0 %v129
  %172 = vmatprep.subr.bf16.mxu0 %v128
  %173 = vmatpush1.bf16.msra.mxu0 %v127
  %174 = vmatprep.subr.bf16.mxu0 %v126
  %175 = vmatpush1.bf16.msra.mxu0 %v125
  %176 = vmatprep.subr.bf16.mxu0 %v124
  %177 = vmatpush1.bf16.msra.mxu0 %v123
  %178 = vmatprep.subr.bf16.mxu0 %v122
  %179 = vmatpush1.bf16.msra.mxu0 %v121
  %180 = vmatprep.subr.bf16.mxu0 0
  %181 = vmatpush2.bf16.msra.mxu0 0
  %182 = vmatprep.subr.bf16.mxu0 0
  %183 = vmatpush2.bf16.msra.mxu0 0
  %184 = vmatprep.subr.bf16.mxu0 0
  %185 = vmatpush2.bf16.msra.mxu0 0
  %186 = vmatprep.subr.bf16.mxu0 0
  %187 = vmatpush2.bf16.msra.mxu0 0
  %188 = vmatprep.subr.bf16.mxu0 0
  %189 = vmatpush2.bf16.msra.mxu0 0
  %190 = vmatprep.subr.bf16.mxu0 0
  %191 = vmatpush2.bf16.msra.mxu0 0
  %192 = vmatprep.subr.bf16.mxu0 0
  %193 = vmatpush2.bf16.msra.mxu0 0
  %194 = vmatprep.subr.bf16.mxu0 %v138
  %195 = vmatpush2.bf16.msra.mxu0 %v137
  %196 = vmatprep.mubr.bf16.mxu0 %v159
  %197 = vmatmul.mubr.bf16.gmra.mxu0 %v61
  %v198 = vpop.f32.mrf.mxu0
  %v199 = vadd.f32 %v42, %v198
  %v200 = vpop.f32.mrf.mxu0
  %v201 = vadd.f32 %v46, %v200
  %v202 = vpop.f32.mrf.mxu0
  %v203 = vadd.f32 %v42, %v202
  %v204 = vpop.f32.mrf.mxu0
  %v205 = vadd.f32 %v46, %v204
  %206 = vmatprep.mubr.bf16.mxu0 %v162
  %207 = vmatmul.mubr.bf16.gmra.mxu0 %v63
  %v208 = vpop.f32.mrf.mxu0
  %v209 = vadd.f32 %v42, %v208
  %v210 = vpop.f32.mrf.mxu0
  %v211 = vadd.f32 %v46, %v210
  %v212 = vpop.f32.mrf.mxu0
  %v213 = vadd.f32 %v42, %v212
  %v214 = vpop.f32.mrf.mxu0
  %v215 = vadd.f32 %v46, %v214
  %216 = vdwg.mxu0
  %217 = vst [vmem:[%s3] sm:$0xff] %v199
  %218 = vst [vmem:[%s3 + $0x8] sm:$0xff] %v201
  %219 = vst [vmem:[%s3 + $0x10] sm:$0xff] %v203
  %220 = vst [vmem:[%s3 + $0x18] sm:$0xff] %v205
  %221 = vst [vmem:[%s3 + $0x20] sm:$0xff] %v209
  %222 = vst [vmem:[%s3 + $0x28] sm:$0xff] %v211
  %223 = vst [vmem:[%s3 + $0x30] sm:$0xff] %v213
  %224 = vst [vmem:[%s3 + $0x38] sm:$0xff] %v215
  // Predicated region
  $region14: #{_lambda_.1} parent=0 // pred_check
    _
  $region15: #{_lambda_.1} parent=0 // pred_check_branch
    %226 = sbr.rel (0) target = $region17
  $region16: #{_lambda_.1} parent=0 // pred_region
    _
  $region17: #{_lambda_.1} parent=0 // pred_fallthru
    _
  // Predicated region
  $region18: #{_lambda_.1} parent=0 // pred_check
    _
  $region19: #{_lambda_.1} parent=0 // pred_check_branch
    %228 = sbr.rel (0) target = $region21
  $region20: #{_lambda_.1} parent=0 // pred_region
    _
  $region21: #{_lambda_.1} parent=0 // pred_fallthru
    _

</llo_original>
